<compile_context>
chip_gen: v6e
topology: v6e:2x2x1
jax: 0.10.0
libtpu: 0.0.40
codegen_flags: <defaults>
</compile_context>

<pallas_src>
import jax
import jax.numpy as jnp
from jax import lax
from jax.experimental import pallas as pl
from jax.experimental.pallas import tpu as pltpu

_LANE = 128


def _round_up(n, m):
    return ((n + m - 1) // m) * m


def _make_dcph_kernel(n_hidden):
    """Kernel: out(1, TB) = We @ relu6(... relu6(W1 @ x_tile^T) ...)."""

    def kernel(*refs):
        # refs = (x_ref, w1_ref, ..., wN_ref, we_ref, o_ref)
        x_ref = refs[0]
        w_refs = refs[1:1 + n_hidden]
        we_ref = refs[1 + n_hidden]
        o_ref = refs[-1]

        x = x_ref[...]                       # (TB, inputdim) f32, natural layout
        # Contract the feature dim of BOTH operands (== W @ x^T): puts batch on
        # the lane axis of the result without materializing a transposed x copy.
        dn_t = (((1,), (1,)), ((), ()))

        if n_hidden == 0:
            # No hidden layers: expert acts directly on the input features.
            out_tile = lax.dot_general(
                we_ref[...], x, dn_t, preferred_element_type=jnp.float32)   # (1, TB)
        else:
            h = lax.dot_general(
                w_refs[0][...], x, dn_t, preferred_element_type=jnp.float32)  # (h1, TB)
            h = jnp.clip(h, 0.0, 6.0)        # ReLU6 in f32 (v5e VPU has no bf16)
            for w_ref in w_refs[1:]:
                h = jnp.dot(w_ref[...], h, preferred_element_type=jnp.float32)
                h = jnp.clip(h, 0.0, 6.0)
            # Expert head: (1, lastdim) @ (lastdim, TB) -> lane-dense (1, TB).
            out_tile = jnp.dot(we_ref[...], h, preferred_element_type=jnp.float32)

        o_ref[0] = out_tile.astype(o_ref.dtype)   # block is (1, 1, TB)

    return kernel


def _pick_batch_tile(batch, inputdim, hidden_dims, batch_tile, vmem_budget_bytes):
    """Choose the batch tile TB and the number of grid steps.

    Conservative per-batch-row VMEM bytes (f32 everywhere):
      - double-buffered x block (TB, inputdim), lanes padded to 128
      - staged x^T operand of the first matmul
      - one (h, TB) f32 activation per hidden layer (summed: conservative)
      - double-buffered (1, TB) output block (8 sublanes after padding)
    """
    per_row = (2 * _round_up(inputdim, _LANE) * 4
               + _round_up(inputdim, 8) * 4
               + sum(_round_up(h, 8) * 4 for h in hidden_dims)
               + 2 * 8 * 4)
    vmem_cap = max(_LANE, (vmem_budget_bytes // per_row) // _LANE * _LANE)
    cap = max(_LANE, min(_round_up(batch_tile, _LANE), vmem_cap))

    if batch >= 4 * _LANE:
        # Keep >= 2 (roughly balanced) grid steps so v7x's two TensorCores both
        # get work; harmless on single-core v5e/v6e since tiles stay large.
        half = _round_up(-(-batch // 2), _LANE)
        tb = min(cap, half)
    else:
        # Small batch: one full-array tile (block dims equal the array dims, so
        # no lane/sublane-divisibility or out-of-bounds-block concerns).
        tb = min(batch, cap)
    return tb, pl.cdiv(batch, tb)


def deep_coxph_forward(x, hidden_weights, expert_weight, *,
                       batch_tile=16384, vmem_budget_bytes=24 * 1024 * 1024):
    """DeepCoxPH forward pass on TPU via Pallas.

    Args:
      x: (batch, inputdim) float32.
      hidden_weights: list of nn.Linear weights, PyTorch shape (out, in).
      expert_weight: expert nn.Linear weight, PyTorch shape (1, lastdim).
      batch_tile: requested batch tile (clamped by a VMEM model and the batch).
      vmem_budget_bytes: VMEM budget used to cap the tile size.

    Returns:
      (batch, 1) float32 risk scores.
    """
    x = jnp.asarray(x, dtype=jnp.float32)
    batch, inputdim = x.shape
    hidden_weights = [jnp.asarray(w, dtype=jnp.float32) for w in hidden_weights]
    expert_weight = jnp.asarray(expert_weight, dtype=jnp.float32)
    hidden_dims = [int(w.shape[0]) for w in hidden_weights]

    tb, n_tiles = _pick_batch_tile(batch, inputdim, hidden_dims,
                                   batch_tile, vmem_budget_bytes)
    padded = n_tiles * tb

    # x is tiled along batch in its natural layout.  If batch is not a multiple
    # of tb, the last block extends past the array: Pallas bounds the DMA, the
    # stale rows only produce garbage in output lanes that are sliced off below
    # (contraction is over the fully in-bounds feature dim, so no cross-row
    # contamination).  No jnp.pad copy of x is ever made.
    in_specs = [pl.BlockSpec((tb, inputdim), lambda i: (i, 0))]
    for w in hidden_weights + [expert_weight]:
        # Whole (tiny) weight with a constant index_map -> DMA'd once, resident
        # in VMEM across the whole grid.
        in_specs.append(pl.BlockSpec(w.shape, lambda i: (0, 0)))

    # Lane-dense output slab: (n_tiles, 1, TB); reshaped to (batch, 1) below.
    out_spec = pl.BlockSpec((1, 1, tb), lambda i: (i, 0, 0))

    # Advisory cost estimate for XLA scheduling around the custom call.
    flops = 0
    prev = inputdim
    for h in hidden_dims:
        flops += 2 * padded * prev * h
        prev = h
    flops += 2 * padded * prev                                   # expert head
    bytes_accessed = (batch * inputdim * 4
                      + sum(int(w.size) * 4 for w in hidden_weights)
                      + int(expert_weight.size) * 4
                      + padded * 4)

    out = pl.pallas_call(
        _make_dcph_kernel(len(hidden_weights)),
        grid=(n_tiles,),
        out_shape=jax.ShapeDtypeStruct((n_tiles, 1, tb), jnp.float32),
        in_specs=in_specs,
        out_specs=out_spec,
        compiler_params=pltpu.CompilerParams(
            dimension_semantics=("parallel",),
            vmem_limit_bytes=32 * 1024 * 1024),
        cost_estimate=pl.CostEstimate(
            flops=flops, transcendentals=0, bytes_accessed=bytes_accessed),
    )(x, *hidden_weights, expert_weight)

    # (n_tiles, 1, TB) -> (batch, 1); drop any padded lanes of the last tile.
    return out.reshape(-1)[:batch].reshape(batch, 1)


def init_params(key, inputdim, layers):
    """Deterministic synthetic parameter init (shapes match the PyTorch module)."""
    keys = jax.random.split(key, len(layers) + 1)
    hidden_weights = []
    prevdim = inputdim
    for i, h in enumerate(layers):
        # nn.Linear(prevdim, h, bias=False) -> weight shape (h, prevdim)
        w = jax.random.normal(keys[i], (h, prevdim), dtype=jnp.float32)
        w = w * (1.0 / jnp.sqrt(jnp.float32(prevdim)))
        hidden_weights.append(w)
        prevdim = h
    lastdim = layers[-1] if len(layers) > 0 else inputdim
    # nn.Linear(lastdim, 1, bias=False) -> weight shape (1, lastdim)
    we = jax.random.normal(keys[-1], (1, lastdim), dtype=jnp.float32)
    we = we * (1.0 / jnp.sqrt(jnp.float32(lastdim)))
    return hidden_weights, we


def reference_forward(x, hidden_weights, expert_weight):
    """Pure-JAX f32 reference of the exact PyTorch forward semantics."""
    h = x
    for w in hidden_weights:
        h = jnp.clip(jnp.dot(h, w.T, precision='highest'), 0.0, 6.0)
    return jnp.dot(h, expert_weight.T, precision='highest')


if __name__ == "__main__":
    key = jax.random.PRNGKey(0)
    kx, kp = jax.random.split(key)

    batch, inputdim = 128, 32
    layers = [64, 32]  # hidden layer sizes, as in DeepCoxPHTorch(layers=[64, 32])

    x = jax.random.normal(kx, (batch, inputdim), dtype=jnp.float32)
    hidden_weights, expert_weight = init_params(kp, inputdim, layers)

    fwd = jax.jit(deep_coxph_forward)
    out = jax.block_until_ready(fwd(x, hidden_weights, expert_weight))

    assert out.shape == (batch, 1), out.shape
    assert bool(jnp.all(jnp.isfinite(out))), "non-finite output"

    # f32 reference of the exact PyTorch semantics.  Tolerance leaves room for
    # the MXU's f32-matmul pass decomposition at default precision.
    ref = reference_forward(x, hidden_weights, expert_weight)
    assert jnp.allclose(out, ref, atol=5e-2, rtol=5e-2), (out, ref)

    print("KERNEL_OK")
</pallas_src>

<mosaic_0001>
module attributes {stable_mosaic.version = 11 : i64} {
  func.func @kernel(%arg0: i32, %arg1: memref<128x32xf32, #tpu.memory_space<vmem>>, %arg2: memref<64x32xf32, #tpu.memory_space<vmem>>, %arg3: memref<32x64xf32, #tpu.memory_space<vmem>>, %arg4: memref<1x32xf32, #tpu.memory_space<vmem>>, %arg5: memref<1x1x128xf32, #tpu.memory_space<vmem>>) attributes {dimension_semantics = [#tpu.dimension_semantics<parallel>], iteration_bounds = array<i64: 1>, scalar_prefetch = 0 : i64, scratch_operands = 0 : i64, tpu.core_type = #tpu.core_type<tc>, window_params = [{transform_indices = @transform_0, window_bounds = array<i64: 128, 32>}, {pipeline_mode = #tpu.pipeline_mode<synchronous>, transform_indices = @transform_1, window_bounds = array<i64: 64, 32>}, {pipeline_mode = #tpu.pipeline_mode<synchronous>, transform_indices = @transform_2, window_bounds = array<i64: 32, 64>}, {pipeline_mode = #tpu.pipeline_mode<synchronous>, transform_indices = @transform_3, window_bounds = array<i64: 1, 32>}, {transform_indices = @transform_4, window_bounds = array<i64: 1, 1, 128>}]} {
    %c0 = arith.constant 0 : index
    %c0_0 = arith.constant 0 : index
    %0 = vector.load %arg1[%c0, %c0_0] : memref<128x32xf32, #tpu.memory_space<vmem>>, vector<128x32xf32>
    %c0_1 = arith.constant 0 : index
    %c0_2 = arith.constant 0 : index
    %1 = vector.load %arg2[%c0_1, %c0_2] : memref<64x32xf32, #tpu.memory_space<vmem>>, vector<64x32xf32>
    %cst = arith.constant dense<0.000000e+00> : vector<64x128xf32>
    %2 = tpu.matmul %1, %0, %cst {dimension_numbers = #tpu.dot_dimension_numbers<[1], [1], [0], [0], [0, 0, 1, 0], [], []>} : vector<64x32xf32>, vector<128x32xf32>, vector<64x128xf32> -> vector<64x128xf32>
    %cst_3 = arith.constant 0.000000e+00 : f32
    %cst_4 = arith.constant 6.000000e+00 : f32
    %3 = vector.broadcast %cst_3 : f32 to vector<64x128xf32>
    %4 = arith.maximumf %3, %2 : vector<64x128xf32>
    %5 = vector.broadcast %cst_4 : f32 to vector<64x128xf32>
    %6 = arith.minimumf %5, %4 : vector<64x128xf32>
    %c0_5 = arith.constant 0 : index
    %c0_6 = arith.constant 0 : index
    %7 = vector.load %arg3[%c0_5, %c0_6] : memref<32x64xf32, #tpu.memory_space<vmem>>, vector<32x64xf32>
    %cst_7 = arith.constant dense<0.000000e+00> : vector<32x128xf32>
    %8 = tpu.matmul %7, %6, %cst_7 {dimension_numbers = #tpu.dot_dimension_numbers<[1], [0], [0], [1], [0, 0, 1, 1], [], []>} : vector<32x64xf32>, vector<64x128xf32>, vector<32x128xf32> -> vector<32x128xf32>
    %cst_8 = arith.constant 0.000000e+00 : f32
    %cst_9 = arith.constant 6.000000e+00 : f32
    %9 = vector.broadcast %cst_8 : f32 to vector<32x128xf32>
    %10 = arith.maximumf %9, %8 : vector<32x128xf32>
    %11 = vector.broadcast %cst_9 : f32 to vector<32x128xf32>
    %12 = arith.minimumf %11, %10 : vector<32x128xf32>
    %c0_10 = arith.constant 0 : index
    %c0_11 = arith.constant 0 : index
    %13 = vector.load %arg4[%c0_10, %c0_11] : memref<1x32xf32, #tpu.memory_space<vmem>>, vector<1x32xf32>
    %cst_12 = arith.constant dense<0.000000e+00> : vector<1x128xf32>
    %14 = tpu.matmul %13, %12, %cst_12 {dimension_numbers = #tpu.dot_dimension_numbers<[1], [0], [0], [1], [0, 0, 1, 1], [], []>} : vector<1x32xf32>, vector<32x128xf32>, vector<1x128xf32> -> vector<1x128xf32>
    %c0_13 = arith.constant 0 : index
    %c0_14 = arith.constant 0 : index
    %c0_15 = arith.constant 0 : index
    %15 = vector.load %arg5[%c0_13, %c0_14, %c0_15] : memref<1x1x128xf32, #tpu.memory_space<vmem>>, vector<1x1x128xf32>
    %16 = vector.shape_cast %15 : vector<1x1x128xf32> to vector<1x128xf32>
    %17 = vector.shape_cast %14 : vector<1x128xf32> to vector<1x1x128xf32>
    tpu.vector_store %arg5[%c0_13, %c0_14, %c0_15], %17 {strides = array<i32>} : memref<1x1x128xf32, #tpu.memory_space<vmem>>, vector<1x1x128xf32>,
    return
  }
  func.func @transform_0(%arg0: i32) -> (i32, i32) {
    %c0_i32 = arith.constant 0 : i32
    %c0_i32_0 = arith.constant 0 : i32
    return %arg0, %c0_i32 : i32, i32
  }
  func.func @transform_1(%arg0: i32) -> (i32, i32) {
    %c0_i32 = arith.constant 0 : i32
    %c0_i32_0 = arith.constant 0 : i32
    %c0_i32_1 = arith.constant 0 : i32
    return %c0_i32, %c0_i32_0 : i32, i32
  }
  func.func @transform_2(%arg0: i32) -> (i32, i32) {
    %c0_i32 = arith.constant 0 : i32
    %c0_i32_0 = arith.constant 0 : i32
    %c0_i32_1 = arith.constant 0 : i32
    return %c0_i32, %c0_i32_0 : i32, i32
  }
  func.func @transform_3(%arg0: i32) -> (i32, i32) {
    %c0_i32 = arith.constant 0 : i32
    %c0_i32_0 = arith.constant 0 : i32
    %c0_i32_1 = arith.constant 0 : i32
    return %c0_i32, %c0_i32_0 : i32, i32
  }
  func.func @transform_4(%arg0: i32) -> (i32, i32, i32) {
    %c0_i32 = arith.constant 0 : i32
    %c0_i32_0 = arith.constant 0 : i32
    %c0_i32_1 = arith.constant 0 : i32
    return %arg0, %c0_i32, %c0_i32_0 : i32, i32, i32
  }
}

</mosaic_0001>

<llo_original>
// kernel: deep_coxph_forward.1
$region0: #{deep_coxph_forward.1}
  #allocation0 [shape = 'u32[]', space=smem, size = 0x4, offset = 0x4, fixed_abs, tag = 'smem constant byte address 0x4 - core index']
  #allocation1 [shape = 'u32[144,128]{1,0:T(1,128)}', space=vmem, size = 0x12000, scoped, tag = 'internal scratch']
  %s0 = inlined_call_operand.vmem [shape: f32[128,32], index: 0, kind: input, shape index: {}]
  %s1 = inlined_call_operand.vmem [shape: f32[64,32], index: 1, kind: input, shape index: {}]
  %s2 = inlined_call_operand.vmem [shape: f32[32,64], index: 2, kind: input, shape index: {}]
  %s3 = inlined_call_operand.vmem [shape: f32[1,32], index: 3, kind: input, shape index: {}]
  %s4 = inlined_call_operand.hbm [shape: f32[1,1,128], index: 4, kind: output, shape index: {}]
  %s5 = sld [smem:[#allocation0]]
  $region26: #{deep_coxph_forward.1} parent=0
    _
  %s7 = ssub.s32 1, %s5
  %s8 = scalar_select 0, %s7, %s5
  $region1: #{deep_coxph_forward.1} parent=0
    #allocation2 [shape = 'u8[512]{0}', space=vmem, size = 0x400, scoped, tag = 'output window, operand 0, single buffered']
    #allocation3 [shape = 's32[1]{0}', space=sflag, size = 0x4, scoped, tag = 'scoped memory for deep_coxph_forward.1']
    %9 = vsyncpa [#allocation3], 0
    // Predicated region
    $region2: #{deep_coxph_forward.1} parent=1 // pred_check
      _
    $region3: #{deep_coxph_forward.1} parent=1 // pred_check_branch
      %11 = sbr.rel (0) target = $region5
    $region4: #{deep_coxph_forward.1} parent=1 // pred_region
      _
    $region5: #{deep_coxph_forward.1} parent=1 // pred_fallthru
      _
    // Predicated region
    $region6: #{deep_coxph_forward.1} parent=1 // pred_check
      _
    $region7: #{deep_coxph_forward.1} parent=1 // pred_check_branch
      %13 = sbr.rel (0) target = $region9
    $region8: #{deep_coxph_forward.1} parent=1 // pred_region
      _
    $region9: #{deep_coxph_forward.1} parent=1 // pred_fallthru
      _
    // Predicated region
    $region10: #{deep_coxph_forward.1} parent=1 // pred_check
      _
    $region11: #{deep_coxph_forward.1} parent=1 // pred_check_branch
      %15 = sbr.rel (0) target = $region13
    $region12: #{deep_coxph_forward.1} parent=1 // pred_region
      _
    $region13: #{deep_coxph_forward.1} parent=1 // pred_fallthru
      _
    // Predicated region
    $region14: #{deep_coxph_forward.1} parent=1 // pred_check
      _
    $region15: #{deep_coxph_forward.1} parent=1 // pred_check_branch
      %17 = sbr.rel (0) target = $region17
    $region16: #{deep_coxph_forward.1} parent=1 // pred_region
      _
    $region17: #{deep_coxph_forward.1} parent=1 // pred_fallthru
      _
    %v18 = vld [vmem:[%s0] sm:$0xff]
    %v19 = vld [vmem:[%s0 + $0x8] sm:$0xff]
    %v20 = vld [vmem:[%s0 + $0x10] sm:$0xff]
    %v21 = vld [vmem:[%s0 + $0x18] sm:$0xff]
    %v22 = vld [vmem:[%s0 + $0x20] sm:$0xff]
    %v23 = vld [vmem:[%s0 + $0x28] sm:$0xff]
    %v24 = vld [vmem:[%s0 + $0x30] sm:$0xff]
    %v25 = vld [vmem:[%s0 + $0x38] sm:$0xff]
    %v26 = vld [vmem:[%s0 + $0x40] sm:$0xff]
    %v27 = vld [vmem:[%s0 + $0x48] sm:$0xff]
    %v28 = vld [vmem:[%s0 + $0x50] sm:$0xff]
    %v29 = vld [vmem:[%s0 + $0x58] sm:$0xff]
    %v30 = vld [vmem:[%s0 + $0x60] sm:$0xff]
    %v31 = vld [vmem:[%s0 + $0x68] sm:$0xff]
    %v32 = vld [vmem:[%s0 + $0x70] sm:$0xff]
    %v33 = vld [vmem:[%s0 + $0x78] sm:$0xff]
    %v34 = vld [vmem:[%s1] sm:$0xff]
    %v35 = vld [vmem:[%s1 + $0x8] sm:$0xff]
    %v36 = vld [vmem:[%s1 + $0x10] sm:$0xff]
    %v37 = vld [vmem:[%s1 + $0x18] sm:$0xff]
    %v38 = vld [vmem:[%s1 + $0x20] sm:$0xff]
    %v39 = vld [vmem:[%s1 + $0x28] sm:$0xff]
    %v40 = vld [vmem:[%s1 + $0x30] sm:$0xff]
    %v41 = vld [vmem:[%s1 + $0x38] sm:$0xff]
    %vm42 = vcmask 261120
    %v44 = vsel %vm42, %v34, 0
    %v47 = vsel %vm42, %v35, 0
    %v50 = vsel %vm42, %v36, 0
    %v53 = vsel %vm42, %v37, 0
    %v56 = vsel %vm42, %v38, 0
    %v59 = vsel %vm42, %v39, 0
    %v62 = vsel %vm42, %v40, 0
    %v65 = vsel %vm42, %v41, 0
    %v68 = vsel %vm42, %v18, 0
    %v71 = vsel %vm42, %v19, 0
    %v74 = vsel %vm42, %v20, 0
    %v77 = vsel %vm42, %v21, 0
    %v80 = vsel %vm42, %v22, 0
    %v83 = vsel %vm42, %v23, 0
    %v86 = vsel %vm42, %v24, 0
    %v89 = vsel %vm42, %v25, 0
    %v92 = vsel %vm42, %v26, 0
    %v95 = vsel %vm42, %v27, 0
    %v98 = vsel %vm42, %v28, 0
    %v101 = vsel %vm42, %v29, 0
    %v104 = vsel %vm42, %v30, 0
    %v107 = vsel %vm42, %v31, 0
    %v110 = vsel %vm42, %v32, 0
    %v113 = vsel %vm42, %v33, 0
    %115 = vmatprep.subr.mxu0 0.0
    %116 = vmatpush1.xpose.msra.mxu0 %v113
    %117 = vmatprep.subr.mxu0 0.0
    %118 = vmatpush1.xpose.msra.mxu0 %v110
    %119 = vmatprep.subr.mxu0 0.0
    %120 = vmatpush1.xpose.msra.mxu0 %v107
    %121 = vmatprep.subr.mxu0 0.0
    %122 = vmatpush1.xpose.msra.mxu0 %v104
    %123 = vmatprep.subr.mxu0 0.0
    %124 = vmatpush1.xpose.msra.mxu0 %v101
    %125 = vmatprep.subr.mxu0 0.0
    %126 = vmatpush1.xpose.msra.mxu0 %v98
    %127 = vmatprep.subr.mxu0 0.0
    %128 = vmatpush1.xpose.msra.mxu0 %v95
    %129 = vmatprep.subr.mxu0 0.0
    %130 = vmatpush1.xpose.msra.mxu0 %v92
    %131 = vmatprep.subr.mxu0 0.0
    %132 = vmatpush1.xpose.msra.mxu0 %v89
    %133 = vmatprep.subr.mxu0 0.0
    %134 = vmatpush1.xpose.msra.mxu0 %v86
    %135 = vmatprep.subr.mxu0 0.0
    %136 = vmatpush1.xpose.msra.mxu0 %v83
    %137 = vmatprep.subr.mxu0 0.0
    %138 = vmatpush1.xpose.msra.mxu0 %v80
    %139 = vmatprep.subr.mxu0 0.0
    %140 = vmatpush1.xpose.msra.mxu0 %v77
    %141 = vmatprep.subr.mxu0 0.0
    %142 = vmatpush1.xpose.msra.mxu0 %v74
    %143 = vmatprep.subr.mxu0 0.0
    %144 = vmatpush1.xpose.msra.mxu0 %v71
    %145 = vmatprep.subr.mxu0 0.0
    %146 = vmatpush1.xpose.msra.mxu0 %v68
    %147 = vmatprep.subr.mxu0 0.0
    %148 = vmatpush2.xpose.msra.mxu0 0.0
    %149 = vmatprep.subr.mxu0 0.0
    %150 = vmatpush2.xpose.msra.mxu0 0.0
    %151 = vmatprep.subr.mxu0 0.0
    %152 = vmatpush2.xpose.msra.mxu0 0.0
    %153 = vmatprep.subr.mxu0 0.0
    %154 = vmatpush2.xpose.msra.mxu0 0.0
    %155 = vmatprep.subr.mxu0 0.0
    %156 = vmatpush2.xpose.msra.mxu0 0.0
    %157 = vmatprep.subr.mxu0 0.0
    %158 = vmatpush2.xpose.msra.mxu0 0.0
    %159 = vmatprep.subr.mxu0 0.0
    %160 = vmatpush2.xpose.msra.mxu0 0.0
    %161 = vmatprep.subr.mxu0 0.0
    %162 = vmatpush2.xpose.msra.mxu0 0.0
    %163 = vmatprep.subr.mxu0 0.0
    %164 = vmatpush2.xpose.msra.mxu0 0.0
    %165 = vmatprep.subr.mxu0 0.0
    %166 = vmatpush2.xpose.msra.mxu0 0.0
    %167 = vmatprep.subr.mxu0 0.0
    %168 = vmatpush2.xpose.msra.mxu0 0.0
    %169 = vmatprep.subr.mxu0 0.0
    %170 = vmatpush2.xpose.msra.mxu0 0.0
    %171 = vmatprep.subr.mxu0 0.0
    %172 = vmatpush2.xpose.msra.mxu0 0.0
    %173 = vmatprep.subr.mxu0 0.0
    %174 = vmatpush2.xpose.msra.mxu0 0.0
    %175 = vmatprep.subr.mxu0 0.0
    %176 = vmatpush2.xpose.msra.mxu0 0.0
    %177 = vmatprep.subr.mxu0 0.0
    %178 = vmatpush2.xpose.msra.mxu0 0.0
    %179 = vmatprep.mubr.f32.mxu0 0.0
    %180 = vmatmul.mubr.f32.gmra.mxu0 %v44
    %v181 = vpop.f32.mrf.mxu0
    %v182 = vadd.f32 0.0, %v181
    %v183 = vpop.f32.mrf.mxu0
    %184 = vmatprep.mubr.f32.mxu0 0.0
    %185 = vmatmul.mubr.f32.gmra.mxu0 %v47
    %v186 = vpop.f32.mrf.mxu0
    %v187 = vadd.f32 0.0, %v186
    %v188 = vpop.f32.mrf.mxu0
    %189 = vmatprep.mubr.f32.mxu0 0.0
    %190 = vmatmul.mubr.f32.gmra.mxu0 %v50
    %v191 = vpop.f32.mrf.mxu0
    %v192 = vadd.f32 0.0, %v191
    %v193 = vpop.f32.mrf.mxu0
    %194 = vmatprep.mubr.f32.mxu0 0.0
    %195 = vmatmul.mubr.f32.gmra.mxu0 %v53
    %v196 = vpop.f32.mrf.mxu0
    %v197 = vadd.f32 0.0, %v196
    %v198 = vpop.f32.mrf.mxu0
    %199 = vmatprep.mubr.f32.mxu0 0.0
    %200 = vmatmul.mubr.f32.gmra.mxu0 %v56
    %v201 = vpop.f32.mrf.mxu0
    %v202 = vadd.f32 0.0, %v201
    %v203 = vpop.f32.mrf.mxu0
    %204 = vmatprep.mubr.f32.mxu0 0.0
    %205 = vmatmul.mubr.f32.gmra.mxu0 %v59
    %v206 = vpop.f32.mrf.mxu0
    %v207 = vadd.f32 0.0, %v206
    %v208 = vpop.f32.mrf.mxu0
    %209 = vmatprep.mubr.f32.mxu0 0.0
    %210 = vmatmul.mubr.f32.gmra.mxu0 %v62
    %v211 = vpop.f32.mrf.mxu0
    %v212 = vadd.f32 0.0, %v211
    %v213 = vpop.f32.mrf.mxu0
    %214 = vmatprep.mubr.f32.mxu0 0.0
    %215 = vmatmul.mubr.f32.gmra.mxu0 %v65
    %v216 = vpop.f32.mrf.mxu0
    %v217 = vadd.f32 0.0, %v216
    %v218 = vpop.f32.mrf.mxu0
    %219 = vdwg.mxu0
    %v220 = vmax.f32 %v182, 0.0
    %v221 = vmax.f32 %v187, 0.0
    %v222 = vmax.f32 %v192, 0.0
    %v223 = vmax.f32 %v197, 0.0
    %v224 = vmax.f32 %v202, 0.0
    %v225 = vmax.f32 %v207, 0.0
    %v226 = vmax.f32 %v212, 0.0
    %v227 = vmax.f32 %v217, 0.0
    %v228 = vmin.f32 %v220, 6.0
    %v229 = vmin.f32 %v221, 6.0
    %v230 = vmin.f32 %v222, 6.0
    %v231 = vmin.f32 %v223, 6.0
    %v232 = vmin.f32 %v224, 6.0
    %v233 = vmin.f32 %v225, 6.0
    %v234 = vmin.f32 %v226, 6.0
    %v235 = vmin.f32 %v227, 6.0
    %v236 = vld [vmem:[%s2] sm:$0xff]
    %v237 = vld [vmem:[%s2 + $0x8] sm:$0xff]
    %v238 = vld [vmem:[%s2 + $0x10] sm:$0xff]
    %v239 = vld [vmem:[%s2 + $0x18] sm:$0xff]
    %vm240 = vcmask 523264
    %v242 = vsel %vm240, %v236, 0
    %v245 = vsel %vm240, %v237, 0
    %v248 = vsel %vm240, %v238, 0
    %v251 = vsel %vm240, %v239, 0
    %253 = vmatprep.subr.mxu0 0.0
    %254 = vmatpush1.msra.mxu0 0.0
    %255 = vmatprep.subr.mxu0 0.0
    %256 = vmatpush1.msra.mxu0 0.0
    %257 = vmatprep.subr.mxu0 0.0
    %258 = vmatpush1.msra.mxu0 0.0
    %259 = vmatprep.subr.mxu0 0.0
    %260 = vmatpush1.msra.mxu0 0.0
    %261 = vmatprep.subr.mxu0 0.0
    %262 = vmatpush1.msra.mxu0 0.0
    %263 = vmatprep.subr.mxu0 0.0
    %264 = vmatpush1.msra.mxu0 0.0
    %265 = vmatprep.subr.mxu0 0.0
    %266 = vmatpush1.msra.mxu0 0.0
    %267 = vmatprep.subr.mxu0 0.0
    %268 = vmatpush1.msra.mxu0 0.0
    %269 = vmatprep.subr.mxu0 0.0
    %270 = vmatpush1.msra.mxu0 %v235
    %271 = vmatprep.subr.mxu0 0.0
    %272 = vmatpush1.msra.mxu0 %v234
    %273 = vmatprep.subr.mxu0 0.0
    %274 = vmatpush1.msra.mxu0 %v233
    %275 = vmatprep.subr.mxu0 0.0
    %276 = vmatpush1.msra.mxu0 %v232
    %277 = vmatprep.subr.mxu0 0.0
    %278 = vmatpush1.msra.mxu0 %v231
    %279 = vmatprep.subr.mxu0 0.0
    %280 = vmatpush1.msra.mxu0 %v230
    %281 = vmatprep.subr.mxu0 0.0
    %282 = vmatpush1.msra.mxu0 %v229
    %283 = vmatprep.subr.mxu0 0.0
    %284 = vmatpush1.msra.mxu0 %v228
    %285 = vmatprep.subr.mxu0 0.0
    %286 = vmatpush2.msra.mxu0 0.0
    %287 = vmatprep.subr.mxu0 0.0
    %288 = vmatpush2.msra.mxu0 0.0
    %289 = vmatprep.subr.mxu0 0.0
    %290 = vmatpush2.msra.mxu0 0.0
    %291 = vmatprep.subr.mxu0 0.0
    %292 = vmatpush2.msra.mxu0 0.0
    %293 = vmatprep.subr.mxu0 0.0
    %294 = vmatpush2.msra.mxu0 0.0
    %295 = vmatprep.subr.mxu0 0.0
    %296 = vmatpush2.msra.mxu0 0.0
    %297 = vmatprep.subr.mxu0 0.0
    %298 = vmatpush2.msra.mxu0 0.0
    %299 = vmatprep.subr.mxu0 0.0
    %300 = vmatpush2.msra.mxu0 0.0
    %301 = vmatprep.subr.mxu0 0.0
    %302 = vmatpush2.msra.mxu0 0.0
    %303 = vmatprep.subr.mxu0 0.0
    %304 = vmatpush2.msra.mxu0 0.0
    %305 = vmatprep.subr.mxu0 0.0
    %306 = vmatpush2.msra.mxu0 0.0
    %307 = vmatprep.subr.mxu0 0.0
    %308 = vmatpush2.msra.mxu0 0.0
    %309 = vmatprep.subr.mxu0 0.0
    %310 = vmatpush2.msra.mxu0 0.0
    %311 = vmatprep.subr.mxu0 0.0
    %312 = vmatpush2.msra.mxu0 0.0
    %313 = vmatprep.subr.mxu0 0.0
    %314 = vmatpush2.msra.mxu0 0.0
    %315 = vmatprep.subr.mxu0 0.0
    %316 = vmatpush2.msra.mxu0 0.0
    %317 = vmatprep.mubr.f32.mxu0 0.0
    %318 = vmatmul.mubr.f32.gmra.mxu0 %v242
    %v319 = vpop.f32.mrf.mxu0
    %v320 = vadd.f32 0.0, %v319
    %v321 = vpop.f32.mrf.mxu0
    %322 = vmatprep.mubr.f32.mxu0 0.0
    %323 = vmatmul.mubr.f32.gmra.mxu0 %v245
    %v324 = vpop.f32.mrf.mxu0
    %v325 = vadd.f32 0.0, %v324
    %v326 = vpop.f32.mrf.mxu0
    %327 = vmatprep.mubr.f32.mxu0 0.0
    %328 = vmatmul.mubr.f32.gmra.mxu0 %v248
    %v329 = vpop.f32.mrf.mxu0
    %v330 = vadd.f32 0.0, %v329
    %v331 = vpop.f32.mrf.mxu0
    %332 = vmatprep.mubr.f32.mxu0 0.0
    %333 = vmatmul.mubr.f32.gmra.mxu0 %v251
    %v334 = vpop.f32.mrf.mxu0
    %v335 = vadd.f32 0.0, %v334
    %v336 = vpop.f32.mrf.mxu0
    %337 = vdwg.mxu0
    %v338 = vmax.f32 %v320, 0.0
    %v339 = vmax.f32 %v325, 0.0
    %v340 = vmax.f32 %v330, 0.0
    %v341 = vmax.f32 %v335, 0.0
    %v342 = vmin.f32 %v338, 6.0
    %v343 = vmin.f32 %v339, 6.0
    %v344 = vmin.f32 %v340, 6.0
    %v345 = vmin.f32 %v341, 6.0
    %v346 = vld [vmem:[%s3] sm:$0x1]
    %v348 = vsel %vm42, %v346, 0
    %350 = vmatprep.subr.mxu0 0.0
    %351 = vmatpush1.msra.mxu0 0.0
    %352 = vmatprep.subr.mxu0 0.0
    %353 = vmatpush1.msra.mxu0 0.0
    %354 = vmatprep.subr.mxu0 0.0
    %355 = vmatpush1.msra.mxu0 0.0
    %356 = vmatprep.subr.mxu0 0.0
    %357 = vmatpush1.msra.mxu0 0.0
    %358 = vmatprep.subr.mxu0 0.0
    %359 = vmatpush1.msra.mxu0 0.0
    %360 = vmatprep.subr.mxu0 0.0
    %361 = vmatpush1.msra.mxu0 0.0
    %362 = vmatprep.subr.mxu0 0.0
    %363 = vmatpush1.msra.mxu0 0.0
    %364 = vmatprep.subr.mxu0 0.0
    %365 = vmatpush1.msra.mxu0 0.0
    %366 = vmatprep.subr.mxu0 0.0
    %367 = vmatpush1.msra.mxu0 0.0
    %368 = vmatprep.subr.mxu0 0.0
    %369 = vmatpush1.msra.mxu0 0.0
    %370 = vmatprep.subr.mxu0 0.0
    %371 = vmatpush1.msra.mxu0 0.0
    %372 = vmatprep.subr.mxu0 0.0
    %373 = vmatpush1.msra.mxu0 0.0
    %374 = vmatprep.subr.mxu0 0.0
    %375 = vmatpush1.msra.mxu0 %v345
    %376 = vmatprep.subr.mxu0 0.0
    %377 = vmatpush1.msra.mxu0 %v344
    %378 = vmatprep.subr.mxu0 0.0
    %379 = vmatpush1.msra.mxu0 %v343
    %380 = vmatprep.subr.mxu0 0.0
    %381 = vmatpush1.msra.mxu0 %v342
    %382 = vmatprep.subr.mxu0 0.0
    %383 = vmatpush2.msra.mxu0 0.0
    %384 = vmatprep.subr.mxu0 0.0
    %385 = vmatpush2.msra.mxu0 0.0
    %386 = vmatprep.subr.mxu0 0.0
    %387 = vmatpush2.msra.mxu0 0.0
    %388 = vmatprep.subr.mxu0 0.0
    %389 = vmatpush2.msra.mxu0 0.0
    %390 = vmatprep.subr.mxu0 0.0
    %391 = vmatpush2.msra.mxu0 0.0
    %392 = vmatprep.subr.mxu0 0.0
    %393 = vmatpush2.msra.mxu0 0.0
    %394 = vmatprep.subr.mxu0 0.0
    %395 = vmatpush2.msra.mxu0 0.0
    %396 = vmatprep.subr.mxu0 0.0
    %397 = vmatpush2.msra.mxu0 0.0
    %398 = vmatprep.subr.mxu0 0.0
    %399 = vmatpush2.msra.mxu0 0.0
    %400 = vmatprep.subr.mxu0 0.0
    %401 = vmatpush2.msra.mxu0 0.0
    %402 = vmatprep.subr.mxu0 0.0
    %403 = vmatpush2.msra.mxu0 0.0
    %404 = vmatprep.subr.mxu0 0.0
    %405 = vmatpush2.msra.mxu0 0.0
    %406 = vmatprep.subr.mxu0 0.0
    %407 = vmatpush2.msra.mxu0 0.0
    %408 = vmatprep.subr.mxu0 0.0
    %409 = vmatpush2.msra.mxu0 0.0
    %410 = vmatprep.subr.mxu0 0.0
    %411 = vmatpush2.msra.mxu0 0.0
    %412 = vmatprep.subr.mxu0 0.0
    %413 = vmatpush2.msra.mxu0 0.0
    %414 = vmatprep.mubr.f32.mxu0 0.0
    %415 = vmatmul.mubr.f32.gmra.mxu0 %v348
    %v416 = vpop.f32.mrf.mxu0
    %v417 = vadd.f32 0.0, %v416
    %v418 = vpop.f32.mrf.mxu0
    %419 = vdwg.mxu0
    %420 = vst [vmem:[#allocation2] sm:$0x1] %v417
    // Predicated region
    $region18: #{deep_coxph_forward.1} parent=1 // pred_check
      _
    $region19: #{deep_coxph_forward.1} parent=1 // pred_check_branch
      %422 = sbr.rel (0) target = $region21
    $region20: #{deep_coxph_forward.1} parent=1 // pred_region
      %s424 = ssub.s32 16, 16
      %425 = vsyncadd [#allocation3], %s424
      %s427 = sshll.u32 [#allocation2], 4
      %s428 = int_to_ptr.vmem [resolvable:$true] %s427
      %430 = dma.vmem_to_hbm [thread:$0]  %s428, 16, %s4, [#allocation3]
    $region21: #{deep_coxph_forward.1} parent=1 // pred_fallthru
      _
    // Predicated region
    $region22: #{deep_coxph_forward.1} parent=1 // pred_check
      _
    $region23: #{deep_coxph_forward.1} parent=1 // pred_check_branch
      %432 = sbr.rel (0) target = $region25
    $region24: #{deep_coxph_forward.1} parent=1 // pred_region
      %433 = dma.done [#allocation3], 16
    $region25: #{deep_coxph_forward.1} parent=1 // pred_fallthru
      _
    %434 = vsyncpa [#allocation3], 1

</llo_original>
